<compile_context>
chip_gen: v5e
topology: v5e:2x2
jax: 0.10.0
libtpu: 0.0.40
codegen_flags: <defaults>
</compile_context>

<pallas_src>
import functools

import jax
import jax.numpy as jnp
from jax.experimental import pallas as pl
from jax.experimental.pallas import tpu as pltpu

ENV_FACTOR_NUM = 4  # `env_factor_num` global from the original module file


def _round_up(x, n):
    return ((x + n - 1) // n) * n


# --------------------------------------------------------------------------
# Kernel 1: fused RNNFusion forward (tanh RNN recurrence + fusion Linear).
# Single invocation, no grid: every operand is small and lives whole in VMEM.
# --------------------------------------------------------------------------
def _rnn_fusion_kernel(inp_ref, h0_ref, w_ih_ref, w_hh_ref, b_rnn_ref,
                       w_h_ref, w_e_oe_ref, b_fc_ref, out_ref,
                       *, seq_len, env_num):
    # inp_ref   : (B, F, T+E)  raw input_x (no wrapper transpose)
    # h0_ref    : (B, H)
    # w_ih_ref  : (F, H)     w_hh_ref   : (H, H)    b_rnn_ref : (1, H)
    # w_h_ref   : (H, O)     w_e_oe_ref : (O, E)    b_fc_ref  : (1, O)
    # out_ref   : (B, O)
    bsz = inp_ref.shape[0]
    fdim = inp_ref.shape[1]
    hdim = w_hh_ref.shape[0]

    x_all = inp_ref[...].astype(jnp.float32)                      # (B, F, T+E)

    # Hoist weight casts / broadcasts out of the time loop.
    w_ih = jnp.broadcast_to(
        w_ih_ref[...].astype(jnp.float32)[None, :, :], (bsz, fdim, hdim))
    w_hh = w_hh_ref[...].astype(jnp.float32)                      # (H, H)
    b_rnn = b_rnn_ref[...].astype(jnp.float32)                    # (1, H)

    h = h0_ref[...].astype(jnp.float32)                           # (B, H)
    # Fully unrolled recurrence (seq_len is a trace-time constant): replaces
    # the old grid=(s,) per-step pipeline.
    for t in range(seq_len):
        x_col = x_all[:, :, t:t + 1]                              # (B, F, 1)
        # Input projection on the VPU (F is tiny; the MXU would be >99% idle).
        u_t = jnp.sum(x_col * w_ih, axis=1)                       # (B, H)
        h = jnp.tanh(
            u_t
            + jnp.dot(h, w_hh, preferred_element_type=jnp.float32)
            + b_rnn)

    # env_factor_vec = input_x[:, :, T:]; FusionBase takes env[:, :1, :].
    env = x_all[:, 0:1, seq_len:seq_len + env_num]                # (B, 1, E)

    # Fusion head: cat([h_n, env]) @ W.T + b, split algebraically.
    acc = jnp.dot(h, w_h_ref[...].astype(jnp.float32),
                  preferred_element_type=jnp.float32)             # (B, O)
    # env contribution on the VPU (contraction length E is tiny).
    w_e_oe = w_e_oe_ref[...].astype(jnp.float32)[None, :, :]      # (1, O, E)
    acc = acc + jnp.sum(env * w_e_oe, axis=-1)                    # (B, O)
    out_ref[...] = (acc + b_fc_ref[...].astype(jnp.float32)).astype(out_ref.dtype)


def rnn_fusion_forward(input_x, time_series_len, h0,
                       w_ih, w_hh, b_ih, b_hh, fc_weight, fc_bias):
    """
    input_x   : (batch, feature, time_series_len + env_factor_num)
    h0        : (batch, hidden)  (explicit stand-in for torch.randn h_0)
    w_ih      : (hidden, feature)   w_hh : (hidden, hidden)    (nn.RNN layout)
    fc_weight : (output_size, hidden + env_factor_num)         (nn.Linear layout)
    """
    # TODO(synk): PyTorch draws h_0 with torch.randn on every call (fresh device
    # RNG); here h_0 is an explicit deterministic input instead.
    bsz, _, total = input_x.shape
    env_num = total - time_series_len
    hdim = w_ih.shape[0]
    out_size = fc_weight.shape[0]
    if fc_weight.shape[1] != hdim + env_num:
        raise ValueError("fc_weight shape does not match hidden + env sizes")

    # One-off tiny weight re-layouts (32x32-scale XLA ops, negligible).
    w_ih_t = jnp.transpose(w_ih)                    # (F, H)
    w_hh_t = jnp.transpose(w_hh)                    # (H, H)
    b_rnn = (b_ih + b_hh).reshape(1, hdim)
    w_h_t = jnp.transpose(fc_weight[:, :hdim])      # (H, O)
    w_e_oe = fc_weight[:, hdim:]                    # (O, E)  PyTorch layout
    b_fc = fc_bias.reshape(1, out_size)

    kernel = functools.partial(_rnn_fusion_kernel,
                               seq_len=time_series_len, env_num=env_num)
    vmem = pl.BlockSpec(memory_space=pltpu.MemorySpace.VMEM)
    out = pl.pallas_call(
        kernel,
        out_shape=jax.ShapeDtypeStruct((bsz, out_size), input_x.dtype),
        in_specs=[vmem] * 8,
        out_specs=vmem,
    )(input_x, h0, w_ih_t, w_hh_t, b_rnn, w_h_t, w_e_oe, b_fc)
    if out_size == 1:
        return out.reshape(-1)                      # == res.view(-1)
    return out


# --------------------------------------------------------------------------
# Kernel 2: standalone FusionBase head (concat + Linear) for arbitrary (s*b).
# --------------------------------------------------------------------------
def _fusion_gemv_kernel(rnn_ref, env_ref, w_ref, out_ref):
    # out_size == 1 path: VPU multiply + lane reduction, no MXU.
    # rnn_ref : (TM, H)   env_ref : (TM, E)
    # w_ref   : (1, H+E+1) packed as [w_h | w_e | bias]
    # out_ref : (TM, 1)
    # TODO(synk): a lane-dense (1, TM) output slab would avoid masked column
    # stores on v5e's single store slot; kept as (TM, 1) for lowering simplicity.
    hh = rnn_ref.shape[1]
    ee = env_ref.shape[1]
    w = w_ref[...].astype(jnp.float32)
    acc = jnp.sum(rnn_ref[...].astype(jnp.float32) * w[:, :hh],
                  axis=-1, keepdims=True)
    acc = acc + jnp.sum(env_ref[...].astype(jnp.float32) * w[:, hh:hh + ee],
                        axis=-1, keepdims=True)
    out_ref[...] = (acc + w[:, hh + ee:hh + ee + 1]).astype(out_ref.dtype)


def _fusion_matmul_kernel(rnn_ref, env_ref, w_h_ref, w_e_ref, b_ref, out_ref,
                          *, env_on_vpu):
    # General out_size path: one MXU matmul over H; env contribution on the VPU
    # when the contraction length E is tiny (a K=4 MXU pass wastes the array).
    acc = jnp.dot(rnn_ref[...].astype(jnp.float32),
                  w_h_ref[...].astype(jnp.float32),
                  preferred_element_type=jnp.float32)
    env = env_ref[...].astype(jnp.float32)
    w_e = w_e_ref[...].astype(jnp.float32)
    if env_on_vpu:
        for j in range(env.shape[1]):
            acc = acc + env[:, j:j + 1] * w_e[j:j + 1, :]
    else:
        acc = acc + jnp.dot(env, w_e, preferred_element_type=jnp.float32)
    out_ref[...] = (acc + b_ref[...].astype(jnp.float32)).astype(out_ref.dtype)


def _fusion_tile_rows(m, h, e, out_size, block_m):
    """Row tile that (a) fits a ~8 MiB double-buffered VMEM budget and
    (b) produces >= 2 grid blocks when there is enough work (v7x megacore)."""
    per_row_bytes = 4 * 2 * (h + e + out_size)        # f32, double-buffered
    tm_cap = max(8, min(block_m, (8 << 20) // per_row_bytes) // 8 * 8)
    if m < 16:
        return m                                      # single block == full dim
    return max(8, min(tm_cap, _round_up(pl.cdiv(m, 2), 8)))


def fusion_forward(rnn_output, env_factor_vec, weight, bias, *, block_m=1024):
    """
    FusionBase.forward:
      rnn_output     : (s, b, h)
      env_factor_vec : (n0, n1, e)   with n0 * (1 if n1 > 1 else n1) == s * b
      weight         : (output_size, h + e)   (PyTorch nn.Linear layout)
      bias           : (output_size,)
    """
    s, b, h = rnn_output.shape
    m = s * b
    rnn_flat = rnn_output.reshape(m, h)

    if env_factor_vec.shape[1] > 1:
        env_factor_vec = env_factor_vec[:, :1, :]
    env_flat = env_factor_vec.reshape(
        env_factor_vec.shape[0] * env_factor_vec.shape[1], -1)
    e = env_flat.shape[1]
    if env_flat.shape[0] != m:
        raise ValueError(
            f"env_factor_vec rows ({env_flat.shape[0]}) != s*b ({m})")

    out_size = weight.shape[0]
    if weight.shape[1] != h + e:
        raise ValueError("weight shape does not match hidden + env sizes")
    out_dtype = rnn_output.dtype

    # Ragged M handled by a partial final block (no jnp.pad HBM pass).
    tm = _fusion_tile_rows(m, h, e, out_size, block_m)
    grid = (pl.cdiv(m, tm),)
    cparams = pltpu.CompilerParams(
        dimension_semantics=("parallel",),
        vmem_limit_bytes=32 * 1024 * 1024)

    if out_size == 1:
        # Prepack [w_h | w_e | bias] into one resident row; VPU-only kernel.
        packed_w = jnp.concatenate(
            [weight.reshape(-1), bias.reshape(-1)], axis=0).reshape(1, h + e + 1)
        out = pl.pallas_call(
            _fusion_gemv_kernel,
            out_shape=jax.ShapeDtypeStruct((m, 1), out_dtype),
            grid=grid,
            in_specs=[
                pl.BlockSpec((tm, h), lambda i: (i, 0)),
                pl.BlockSpec((tm, e), lambda i: (i, 0)),
                pl.BlockSpec((1, h + e + 1), lambda i: (0, 0)),
            ],
            out_specs=pl.BlockSpec((tm, 1), lambda i: (i, 0)),
            compiler_params=cparams,
        )(rnn_flat, env_flat, packed_w)
        return out[:, 0]                              # == res.view(-1)

    # out_size > 1: MXU over H, env contribution on the VPU when E is small.
    w_h = jnp.transpose(weight[:, :h])                # (h, out)
    w_e = jnp.transpose(weight[:, h:])                # (e, out)
    b2d = bias.reshape(1, out_size)
    kernel = functools.partial(_fusion_matmul_kernel, env_on_vpu=(e <= 16))
    out = pl.pallas_call(
        kernel,
        out_shape=jax.ShapeDtypeStruct((m, out_size), out_dtype),
        grid=grid,
        in_specs=[
            pl.BlockSpec((tm, h), lambda i: (i, 0)),
            pl.BlockSpec((tm, e), lambda i: (i, 0)),
            pl.BlockSpec((h, out_size), lambda i: (0, 0)),
            pl.BlockSpec((e, out_size), lambda i: (0, 0)),
            pl.BlockSpec((1, out_size), lambda i: (0, 0)),
        ],
        out_specs=pl.BlockSpec((tm, out_size), lambda i: (i, 0)),
        compiler_params=cparams,
    )(rnn_flat, env_flat, w_h, w_e, b2d)
    return out


if __name__ == "__main__":
    # Shapes implied by the module: batch=2, input_feature=4, time_series_len=8,
    # hidden_size=32, env_factor_num=4, output_size=1.
    batch, feature, seq_len = 2, 4, 8
    hidden, env_num, out_size = 32, ENV_FACTOR_NUM, 1

    key = jax.random.PRNGKey(0)
    keys = jax.random.split(key, 12)

    input_x = jax.random.normal(
        keys[0], (batch, feature, seq_len + env_num), dtype=jnp.float32)

    # nn.RNN(input_size=feature, hidden_size=hidden) parameters (uniform init).
    kr = 1.0 / (hidden ** 0.5)
    w_ih = jax.random.uniform(keys[1], (hidden, feature), minval=-kr, maxval=kr)
    w_hh = jax.random.uniform(keys[2], (hidden, hidden), minval=-kr, maxval=kr)
    b_ih = jax.random.uniform(keys[3], (hidden,), minval=-kr, maxval=kr)
    b_hh = jax.random.uniform(keys[4], (hidden,), minval=-kr, maxval=kr)

    # nn.Linear(hidden + env_factor_num, output_size) parameters.
    kf = 1.0 / ((hidden + env_num) ** 0.5)
    fc_w = jax.random.uniform(keys[5], (out_size, hidden + env_num),
                              minval=-kf, maxval=kf)
    fc_b = jax.random.uniform(keys[6], (out_size,), minval=-kf, maxval=kf)

    # Deterministic stand-in for torch.randn h_0.
    h0 = jax.random.normal(keys[7], (batch, hidden), dtype=jnp.float32)

    res = rnn_fusion_forward(input_x, seq_len, h0,
                             w_ih, w_hh, b_ih, b_hh, fc_w, fc_b)
    jax.block_until_ready(res)

    # Pure-JAX reference for the full forward.
    x_seq = jnp.transpose(input_x[:, :, :seq_len], (2, 0, 1))   # (s, b, f)
    env = input_x[:, :, seq_len:]                               # (b, f, env)

    def step(hprev, x_t):
        return jnp.tanh(x_t @ w_ih.T + b_ih + hprev @ w_hh.T + b_hh), None

    h_last, _ = jax.lax.scan(step, h0, x_seq)
    x_cat = jnp.concatenate([h_last, env[:, 0, :]], axis=1)
    ref = (x_cat @ fc_w.T + fc_b).reshape(-1)
    assert res.shape == (batch,)
    assert jnp.allclose(res, ref, atol=1e-4, rtol=1e-4)

    # Fused path with output_size > 1.
    out2 = 8
    fc_w2 = jax.random.uniform(keys[8], (out2, hidden + env_num),
                               minval=-kf, maxval=kf)
    fc_b2 = jax.random.uniform(keys[9], (out2,), minval=-kf, maxval=kf)
    res_m = rnn_fusion_forward(input_x, seq_len, h0,
                               w_ih, w_hh, b_ih, b_hh, fc_w2, fc_b2)
    jax.block_until_ready(res_m)
    ref_m = x_cat @ fc_w2.T + fc_b2
    assert res_m.shape == (batch, out2)
    assert jnp.allclose(res_m, ref_m, atol=1e-4, rtol=1e-4)

    # Standalone fusion head: ragged m (partial final block) and m >= 16
    # (>= 2 parallel blocks), both out_size==1 (gemv) and out_size>1 (matmul).
    for (s2, b2, out3) in ((5, 2, 8), (12, 2, 1)):
        rnn_out = jax.random.normal(keys[10], (s2, b2, hidden),
                                    dtype=jnp.float32)
        env2 = jax.random.normal(keys[11], (s2 * b2, 3, env_num),
                                 dtype=jnp.float32)
        w3 = jax.random.uniform(keys[5], (out3, hidden + env_num),
                                minval=-kf, maxval=kf)
        b3 = jax.random.uniform(keys[6], (out3,), minval=-kf, maxval=kf)
        got = fusion_forward(rnn_out, env2, w3, b3)
        jax.block_until_ready(got)
        cat = jnp.concatenate(
            [rnn_out.reshape(s2 * b2, hidden), env2[:, 0, :]], axis=1)
        want = cat @ w3.T + b3
        if out3 == 1:
            want = want.reshape(-1)
        assert got.shape == want.shape
        assert jnp.allclose(got, want, atol=1e-4, rtol=1e-4)

    print("KERNEL_OK")
</pallas_src>

<mosaic_0001>
module attributes {stable_mosaic.version = 11 : i64} {
  func.func @_rnn_fusion_kernel(%arg0: memref<2x4x12xf32, #tpu.memory_space<vmem>>, %arg1: memref<2x32xf32, #tpu.memory_space<vmem>>, %arg2: memref<4x32xf32, #tpu.memory_space<vmem>>, %arg3: memref<32x32xf32, #tpu.memory_space<vmem>>, %arg4: memref<1x32xf32, #tpu.memory_space<vmem>>, %arg5: memref<32x1xf32, #tpu.memory_space<vmem>>, %arg6: memref<1x4xf32, #tpu.memory_space<vmem>>, %arg7: memref<1x1xf32, #tpu.memory_space<vmem>>, %arg8: memref<2x1xf32, #tpu.memory_space<vmem>>) attributes {dimension_semantics = [], scalar_prefetch = 0 : i64, scratch_operands = 0 : i64, tpu.core_type = #tpu.core_type<tc>} {
    %c0 = arith.constant 0 : index
    %c0_0 = arith.constant 0 : index
    %c0_1 = arith.constant 0 : index
    %0 = vector.load %arg0[%c0, %c0_0, %c0_1] : memref<2x4x12xf32, #tpu.memory_space<vmem>>, vector<2x4x12xf32>
    %c0_2 = arith.constant 0 : index
    %c0_3 = arith.constant 0 : index
    %1 = vector.load %arg2[%c0_2, %c0_3] : memref<4x32xf32, #tpu.memory_space<vmem>>, vector<4x32xf32>
    %2 = vector.shape_cast %1 : vector<4x32xf32> to vector<1x4x32xf32>
    %3 = vector.shape_cast %2 : vector<1x4x32xf32> to vector<1x4x32xf32>
    %4 = vector.broadcast %3 : vector<1x4x32xf32> to vector<2x4x32xf32>
    %c0_4 = arith.constant 0 : index
    %c0_5 = arith.constant 0 : index
    %5 = vector.load %arg3[%c0_4, %c0_5] : memref<32x32xf32, #tpu.memory_space<vmem>>, vector<32x32xf32>
    %c0_6 = arith.constant 0 : index
    %c0_7 = arith.constant 0 : index
    %6 = vector.load %arg4[%c0_6, %c0_7] : memref<1x32xf32, #tpu.memory_space<vmem>>, vector<1x32xf32>
    %c0_8 = arith.constant 0 : index
    %c0_9 = arith.constant 0 : index
    %7 = vector.load %arg1[%c0_8, %c0_9] : memref<2x32xf32, #tpu.memory_space<vmem>>, vector<2x32xf32>
    %8 = vector.extract_strided_slice %0 {offsets = [0, 0, 0], sizes = [2, 4, 1], strides = [1, 1, 1]} : vector<2x4x12xf32> to vector<2x4x1xf32>
    %9 = vector.broadcast %8 : vector<2x4x1xf32> to vector<2x4x32xf32>
    %10 = arith.mulf %9, %4 : vector<2x4x32xf32>
    %cst = arith.constant dense<0.000000e+00> : vector<2x32xf32>
    %11 = vector.multi_reduction <add>, %10, %cst [1] : vector<2x4x32xf32> to vector<2x32xf32>
    %cst_10 = arith.constant dense<0.000000e+00> : vector<2x32xf32>
    %12 = tpu.matmul %7, %5, %cst_10 {dimension_numbers = #tpu.dot_dimension_numbers<[1], [0], [0], [1], [0, 0, 1, 1], [], []>} : vector<2x32xf32>, vector<32x32xf32>, vector<2x32xf32> -> vector<2x32xf32>
    %13 = arith.addf %11, %12 : vector<2x32xf32>
    %14 = vector.broadcast %6 : vector<1x32xf32> to vector<2x32xf32>
    %15 = arith.addf %13, %14 : vector<2x32xf32>
    %16 = math.tanh %15 : vector<2x32xf32>
    %17 = vector.extract_strided_slice %0 {offsets = [0, 0, 1], sizes = [2, 4, 1], strides = [1, 1, 1]} : vector<2x4x12xf32> to vector<2x4x1xf32>
    %18 = vector.broadcast %17 : vector<2x4x1xf32> to vector<2x4x32xf32>
    %19 = arith.mulf %18, %4 : vector<2x4x32xf32>
    %cst_11 = arith.constant dense<0.000000e+00> : vector<2x32xf32>
    %20 = vector.multi_reduction <add>, %19, %cst_11 [1] : vector<2x4x32xf32> to vector<2x32xf32>
    %cst_12 = arith.constant dense<0.000000e+00> : vector<2x32xf32>
    %21 = tpu.matmul %16, %5, %cst_12 {dimension_numbers = #tpu.dot_dimension_numbers<[1], [0], [0], [1], [0, 0, 1, 1], [], []>} : vector<2x32xf32>, vector<32x32xf32>, vector<2x32xf32> -> vector<2x32xf32>
    %22 = arith.addf %20, %21 : vector<2x32xf32>
    %23 = vector.broadcast %6 : vector<1x32xf32> to vector<2x32xf32>
    %24 = arith.addf %22, %23 : vector<2x32xf32>
    %25 = math.tanh %24 : vector<2x32xf32>
    %26 = vector.extract_strided_slice %0 {offsets = [0, 0, 2], sizes = [2, 4, 1], strides = [1, 1, 1]} : vector<2x4x12xf32> to vector<2x4x1xf32>
    %27 = vector.broadcast %26 : vector<2x4x1xf32> to vector<2x4x32xf32>
    %28 = arith.mulf %27, %4 : vector<2x4x32xf32>
    %cst_13 = arith.constant dense<0.000000e+00> : vector<2x32xf32>
    %29 = vector.multi_reduction <add>, %28, %cst_13 [1] : vector<2x4x32xf32> to vector<2x32xf32>
    %cst_14 = arith.constant dense<0.000000e+00> : vector<2x32xf32>
    %30 = tpu.matmul %25, %5, %cst_14 {dimension_numbers = #tpu.dot_dimension_numbers<[1], [0], [0], [1], [0, 0, 1, 1], [], []>} : vector<2x32xf32>, vector<32x32xf32>, vector<2x32xf32> -> vector<2x32xf32>
    %31 = arith.addf %29, %30 : vector<2x32xf32>
    %32 = vector.broadcast %6 : vector<1x32xf32> to vector<2x32xf32>
    %33 = arith.addf %31, %32 : vector<2x32xf32>
    %34 = math.tanh %33 : vector<2x32xf32>
    %35 = vector.extract_strided_slice %0 {offsets = [0, 0, 3], sizes = [2, 4, 1], strides = [1, 1, 1]} : vector<2x4x12xf32> to vector<2x4x1xf32>
    %36 = vector.broadcast %35 : vector<2x4x1xf32> to vector<2x4x32xf32>
    %37 = arith.mulf %36, %4 : vector<2x4x32xf32>
    %cst_15 = arith.constant dense<0.000000e+00> : vector<2x32xf32>
    %38 = vector.multi_reduction <add>, %37, %cst_15 [1] : vector<2x4x32xf32> to vector<2x32xf32>
    %cst_16 = arith.constant dense<0.000000e+00> : vector<2x32xf32>
    %39 = tpu.matmul %34, %5, %cst_16 {dimension_numbers = #tpu.dot_dimension_numbers<[1], [0], [0], [1], [0, 0, 1, 1], [], []>} : vector<2x32xf32>, vector<32x32xf32>, vector<2x32xf32> -> vector<2x32xf32>
    %40 = arith.addf %38, %39 : vector<2x32xf32>
    %41 = vector.broadcast %6 : vector<1x32xf32> to vector<2x32xf32>
    %42 = arith.addf %40, %41 : vector<2x32xf32>
    %43 = math.tanh %42 : vector<2x32xf32>
    %44 = vector.extract_strided_slice %0 {offsets = [0, 0, 4], sizes = [2, 4, 1], strides = [1, 1, 1]} : vector<2x4x12xf32> to vector<2x4x1xf32>
    %45 = vector.broadcast %44 : vector<2x4x1xf32> to vector<2x4x32xf32>
    %46 = arith.mulf %45, %4 : vector<2x4x32xf32>
    %cst_17 = arith.constant dense<0.000000e+00> : vector<2x32xf32>
    %47 = vector.multi_reduction <add>, %46, %cst_17 [1] : vector<2x4x32xf32> to vector<2x32xf32>
    %cst_18 = arith.constant dense<0.000000e+00> : vector<2x32xf32>
    %48 = tpu.matmul %43, %5, %cst_18 {dimension_numbers = #tpu.dot_dimension_numbers<[1], [0], [0], [1], [0, 0, 1, 1], [], []>} : vector<2x32xf32>, vector<32x32xf32>, vector<2x32xf32> -> vector<2x32xf32>
    %49 = arith.addf %47, %48 : vector<2x32xf32>
    %50 = vector.broadcast %6 : vector<1x32xf32> to vector<2x32xf32>
    %51 = arith.addf %49, %50 : vector<2x32xf32>
    %52 = math.tanh %51 : vector<2x32xf32>
    %53 = vector.extract_strided_slice %0 {offsets = [0, 0, 5], sizes = [2, 4, 1], strides = [1, 1, 1]} : vector<2x4x12xf32> to vector<2x4x1xf32>
    %54 = vector.broadcast %53 : vector<2x4x1xf32> to vector<2x4x32xf32>
    %55 = arith.mulf %54, %4 : vector<2x4x32xf32>
    %cst_19 = arith.constant dense<0.000000e+00> : vector<2x32xf32>
    %56 = vector.multi_reduction <add>, %55, %cst_19 [1] : vector<2x4x32xf32> to vector<2x32xf32>
    %cst_20 = arith.constant dense<0.000000e+00> : vector<2x32xf32>
    %57 = tpu.matmul %52, %5, %cst_20 {dimension_numbers = #tpu.dot_dimension_numbers<[1], [0], [0], [1], [0, 0, 1, 1], [], []>} : vector<2x32xf32>, vector<32x32xf32>, vector<2x32xf32> -> vector<2x32xf32>
    %58 = arith.addf %56, %57 : vector<2x32xf32>
    %59 = vector.broadcast %6 : vector<1x32xf32> to vector<2x32xf32>
    %60 = arith.addf %58, %59 : vector<2x32xf32>
    %61 = math.tanh %60 : vector<2x32xf32>
    %62 = vector.extract_strided_slice %0 {offsets = [0, 0, 6], sizes = [2, 4, 1], strides = [1, 1, 1]} : vector<2x4x12xf32> to vector<2x4x1xf32>
    %63 = vector.broadcast %62 : vector<2x4x1xf32> to vector<2x4x32xf32>
    %64 = arith.mulf %63, %4 : vector<2x4x32xf32>
    %cst_21 = arith.constant dense<0.000000e+00> : vector<2x32xf32>
    %65 = vector.multi_reduction <add>, %64, %cst_21 [1] : vector<2x4x32xf32> to vector<2x32xf32>
    %cst_22 = arith.constant dense<0.000000e+00> : vector<2x32xf32>
    %66 = tpu.matmul %61, %5, %cst_22 {dimension_numbers = #tpu.dot_dimension_numbers<[1], [0], [0], [1], [0, 0, 1, 1], [], []>} : vector<2x32xf32>, vector<32x32xf32>, vector<2x32xf32> -> vector<2x32xf32>
    %67 = arith.addf %65, %66 : vector<2x32xf32>
    %68 = vector.broadcast %6 : vector<1x32xf32> to vector<2x32xf32>
    %69 = arith.addf %67, %68 : vector<2x32xf32>
    %70 = math.tanh %69 : vector<2x32xf32>
    %71 = vector.extract_strided_slice %0 {offsets = [0, 0, 7], sizes = [2, 4, 1], strides = [1, 1, 1]} : vector<2x4x12xf32> to vector<2x4x1xf32>
    %72 = vector.broadcast %71 : vector<2x4x1xf32> to vector<2x4x32xf32>
    %73 = arith.mulf %72, %4 : vector<2x4x32xf32>
    %cst_23 = arith.constant dense<0.000000e+00> : vector<2x32xf32>
    %74 = vector.multi_reduction <add>, %73, %cst_23 [1] : vector<2x4x32xf32> to vector<2x32xf32>
    %cst_24 = arith.constant dense<0.000000e+00> : vector<2x32xf32>
    %75 = tpu.matmul %70, %5, %cst_24 {dimension_numbers = #tpu.dot_dimension_numbers<[1], [0], [0], [1], [0, 0, 1, 1], [], []>} : vector<2x32xf32>, vector<32x32xf32>, vector<2x32xf32> -> vector<2x32xf32>
    %76 = arith.addf %74, %75 : vector<2x32xf32>
    %77 = vector.broadcast %6 : vector<1x32xf32> to vector<2x32xf32>
    %78 = arith.addf %76, %77 : vector<2x32xf32>
    %79 = math.tanh %78 : vector<2x32xf32>
    %80 = vector.extract_strided_slice %0 {offsets = [0, 0, 8], sizes = [2, 1, 4], strides = [1, 1, 1]} : vector<2x4x12xf32> to vector<2x1x4xf32>
    %c0_25 = arith.constant 0 : index
    %c0_26 = arith.constant 0 : index
    %81 = vector.load %arg5[%c0_25, %c0_26] : memref<32x1xf32, #tpu.memory_space<vmem>>, vector<32x1xf32>
    %cst_27 = arith.constant dense<0.000000e+00> : vector<2x1xf32>
    %82 = tpu.matmul %79, %81, %cst_27 {dimension_numbers = #tpu.dot_dimension_numbers<[1], [0], [0], [1], [0, 0, 1, 1], [], []>} : vector<2x32xf32>, vector<32x1xf32>, vector<2x1xf32> -> vector<2x1xf32>
    %c0_28 = arith.constant 0 : index
    %c0_29 = arith.constant 0 : index
    %83 = vector.load %arg6[%c0_28, %c0_29] : memref<1x4xf32, #tpu.memory_space<vmem>>, vector<1x4xf32>
    %84 = vector.shape_cast %83 : vector<1x4xf32> to vector<1x1x4xf32>
    %85 = vector.broadcast %84 : vector<1x1x4xf32> to vector<2x1x4xf32>
    %86 = arith.mulf %80, %85 : vector<2x1x4xf32>
    %cst_30 = arith.constant dense<0.000000e+00> : vector<2x1xf32>
    %87 = vector.multi_reduction <add>, %86, %cst_30 [2] : vector<2x1x4xf32> to vector<2x1xf32>
    %88 = arith.addf %82, %87 : vector<2x1xf32>
    %c0_31 = arith.constant 0 : index
    %c0_32 = arith.constant 0 : index
    %89 = vector.load %arg7[%c0_31, %c0_32] : memref<1x1xf32, #tpu.memory_space<vmem>>, vector<1x1xf32>
    %90 = vector.broadcast %89 : vector<1x1xf32> to vector<2x1xf32>
    %91 = arith.addf %88, %90 : vector<2x1xf32>
    %c0_33 = arith.constant 0 : index
    %c0_34 = arith.constant 0 : index
    %92 = vector.load %arg8[%c0_33, %c0_34] : memref<2x1xf32, #tpu.memory_space<vmem>>, vector<2x1xf32>
    tpu.vector_store %arg8[%c0_33, %c0_34], %91 {strides = array<i32>} : memref<2x1xf32, #tpu.memory_space<vmem>>, vector<2x1xf32>,
    return
  }
}

</mosaic_0001>

<llo_original>
// kernel: tpu_custom_call.1
$region0: #{tpu_custom_call.1}
  #allocation0 [shape = 'u32[]', space=smem, size = 0x4, offset = 0x4, fixed_abs, tag = 'smem constant byte address 0x4 - core index']
  #allocation1 [shape = 'u32[72,128]{1,0:T(1,128)}', space=vmem, size = 0x9000, scoped, tag = 'internal scratch']
  #allocation2 [shape = 'f32[1,1]{1,0:T(1,128)S(1)}', space=vmem, size = 0x200, scoped, tag = 'scoped memory for tpu_custom_call.1']
  %s0 = inlined_call_operand.hbm [shape: f32[2,4,12], index: 0, kind: input, shape index: {}]
  %s1 = inlined_call_operand.vmem [shape: f32[2,32], index: 1, kind: input, shape index: {}]
  %s2 = inlined_call_operand.hbm [shape: f32[4,32], index: 2, kind: input, shape index: {}]
  %s3 = inlined_call_operand.vmem [shape: f32[32,32], index: 3, kind: input, shape index: {}]
  %s4 = inlined_call_operand.vmem [shape: f32[1,32], index: 4, kind: input, shape index: {}]
  %s5 = inlined_call_operand.vmem [shape: f32[32,1], index: 5, kind: input, shape index: {}]
  %s6 = inlined_call_operand.vmem [shape: f32[1,4], index: 6, kind: input, shape index: {}]
  %s7 = inlined_call_operand.<no memory space> [shape: f32[1,1], index: 7, kind: input, shape index: {}]
  %s8 = inlined_call_operand.vmem [shape: f32[2,1], index: 8, kind: output, shape index: {}]
  %s9 = sld [smem:[#allocation0]]
  $region50: #{tpu_custom_call.1} parent=0
    _
  %s11 = ssub.s32 1, %s9
  %s12 = scalar_select 0, %s11, %s9
  %v13 = vstv %s7
  %14 = vst [vmem:[#allocation2] sm:$0x1] %v13
  $region1: #{tpu_custom_call.1} parent=0
    #allocation3 [shape = 'u8[4096]{0}', space=vmem, size = 0x1000, scoped, tag = 'input window, operand 0, single buffered']
    #allocation4 [shape = 's32[1]{0}', space=sflag, size = 0x4, scoped, tag = 'scoped memory for tpu_custom_call.1']
    #allocation5 [shape = 'u8[2048]{0}', space=vmem, size = 0x800, scoped, tag = 'input window, operand 2, single buffered']
    #allocation6 [shape = 's32[1]{0}', space=sflag, size = 0x4, scoped, tag = 'scoped memory for tpu_custom_call.1']
    %15 = vsyncpa [#allocation4], 0
    %16 = vsyncpa [#allocation6], 0
    // Predicated region
    $region2: #{tpu_custom_call.1} parent=1 // pred_check
      _
    $region3: #{tpu_custom_call.1} parent=1 // pred_check_branch
      %18 = sbr.rel (0) target = $region5
    $region4: #{tpu_custom_call.1} parent=1 // pred_region
      %20 = vsyncadd [#allocation4], 0
      %s21 = sshll.u32 %s0, 4
      %s22 = int_to_ptr.hbm [resolvable:$true] %s21
      %s23 = sshll.u32 [#allocation3], 4
      %s24 = int_to_ptr.vmem [resolvable:$true] %s23
      %29 = dma.hbm_to_vmem [thread:$0]  %s22, 128, %s24, [#allocation4], 64, 64, 4
    $region5: #{tpu_custom_call.1} parent=1 // pred_fallthru
      _
    // Predicated region
    $region6: #{tpu_custom_call.1} parent=1 // pred_check
      _
    $region7: #{tpu_custom_call.1} parent=1 // pred_check_branch
      %31 = sbr.rel (0) target = $region9
    $region8: #{tpu_custom_call.1} parent=1 // pred_region
      _
    $region9: #{tpu_custom_call.1} parent=1 // pred_fallthru
      _
    // Predicated region
    $region10: #{tpu_custom_call.1} parent=1 // pred_check
      _
    $region11: #{tpu_custom_call.1} parent=1 // pred_check_branch
      %33 = sbr.rel (0) target = $region13
    $region12: #{tpu_custom_call.1} parent=1 // pred_region
      %35 = vsyncadd [#allocation6], 0
      %s37 = sshll.u32 %s2, 4
      %s38 = int_to_ptr.hbm [resolvable:$true] %s37
      %s39 = sshll.u32 [#allocation5], 4
      %s40 = int_to_ptr.vmem [resolvable:$true] %s39
      %42 = dma.hbm_to_vmem [thread:$0]  %s38, 64, %s40, [#allocation6]
    $region13: #{tpu_custom_call.1} parent=1 // pred_fallthru
      _
    // Predicated region
    $region14: #{tpu_custom_call.1} parent=1 // pred_check
      _
    $region15: #{tpu_custom_call.1} parent=1 // pred_check_branch
      %44 = sbr.rel (0) target = $region17
    $region16: #{tpu_custom_call.1} parent=1 // pred_region
      _
    $region17: #{tpu_custom_call.1} parent=1 // pred_fallthru
      _
    // Predicated region
    $region18: #{tpu_custom_call.1} parent=1 // pred_check
      _
    $region19: #{tpu_custom_call.1} parent=1 // pred_check_branch
      %46 = sbr.rel (0) target = $region21
    $region20: #{tpu_custom_call.1} parent=1 // pred_region
      _
    $region21: #{tpu_custom_call.1} parent=1 // pred_fallthru
      _
    // Predicated region
    $region22: #{tpu_custom_call.1} parent=1 // pred_check
      _
    $region23: #{tpu_custom_call.1} parent=1 // pred_check_branch
      %48 = sbr.rel (0) target = $region25
    $region24: #{tpu_custom_call.1} parent=1 // pred_region
      _
    $region25: #{tpu_custom_call.1} parent=1 // pred_fallthru
      _
    // Predicated region
    $region26: #{tpu_custom_call.1} parent=1 // pred_check
      _
    $region27: #{tpu_custom_call.1} parent=1 // pred_check_branch
      %50 = sbr.rel (0) target = $region29
    $region28: #{tpu_custom_call.1} parent=1 // pred_region
      _
    $region29: #{tpu_custom_call.1} parent=1 // pred_fallthru
      _
    // Predicated region
    $region30: #{tpu_custom_call.1} parent=1 // pred_check
      _
    $region31: #{tpu_custom_call.1} parent=1 // pred_check_branch
      %52 = sbr.rel (0) target = $region33
    $region32: #{tpu_custom_call.1} parent=1 // pred_region
      _
    $region33: #{tpu_custom_call.1} parent=1 // pred_fallthru
      _
    // Predicated region
    $region34: #{tpu_custom_call.1} parent=1 // pred_check
      _
    $region35: #{tpu_custom_call.1} parent=1 // pred_check_branch
      %54 = sbr.rel (0) target = $region37
    $region36: #{tpu_custom_call.1} parent=1 // pred_region
      %56 = dma.done [#allocation4], 128
    $region37: #{tpu_custom_call.1} parent=1 // pred_fallthru
      _
    // Predicated region
    $region38: #{tpu_custom_call.1} parent=1 // pred_check
      _
    $region39: #{tpu_custom_call.1} parent=1 // pred_check_branch
      %58 = sbr.rel (0) target = $region41
    $region40: #{tpu_custom_call.1} parent=1 // pred_region
      %60 = dma.done [#allocation6], 64
    $region41: #{tpu_custom_call.1} parent=1 // pred_fallthru
      _
    %v61 = vld [vmem:[#allocation3] sm:$0xf]
    %v62 = vld [vmem:[#allocation3 + $0x4] sm:$0xf]
    %v63 = vld [vmem:[#allocation5] sm:$0xf]
    %v64 = vld [vmem:[%s3] sm:$0xff]
    %v65 = vld [vmem:[%s3 + $0x8] sm:$0xff]
    %v66 = vld [vmem:[%s3 + $0x10] sm:$0xff]
    %v67 = vld [vmem:[%s3 + $0x18] sm:$0xff]
    %v68 = vld [vmem:[%s4] sm:$0x1]
    %v69 = vld [vmem:[%s1] sm:$0x3]
    %71 = vset.pattern.permute.xlu0 0
    %72 = vperm.xlu0 %71, %v61
    %v73 = vpop.permute.xlu0 %72
    %76 = vset.pattern.permute.xlu0 0
    %77 = vperm.xlu0 %76, %v62
    %v78 = vpop.permute.xlu0 %77
    %v80 = vmul.f32 %v73, %v63
    %v81 = vmul.f32 %v78, %v63
    %vm82 = vcmask 257024
    %v83 = vsel %vm82, %v80, 0.0
    %v84 = vrot.slane %v83, 4
    %v85 = vadd.f32 %v83, %v84
    %v86 = vrot.slane %v85, 2
    %v87 = vadd.f32 %v85, %v86
    %v88 = vrot.slane %v87, 1
    %v89 = vadd.f32 %v87, %v88
    %v90 = vsel %vm82, %v81, 0.0
    %v91 = vrot.slane %v90, 4
    %v92 = vadd.f32 %v90, %v91
    %v93 = vrot.slane %v92, 2
    %v94 = vadd.f32 %v92, %v93
    %v95 = vrot.slane %v94, 1
    %v96 = vadd.f32 %v94, %v95
    %vm97 = vcmask 261120
    %v99 = vsel %vm97, %v69, 0
    %101 = vmatpush.msra.mxu0 0.0
    %102 = vmatpush.msra.mxu0 0.0
    %103 = vmatpush.msra.mxu0 0.0
    %104 = vmatpush.msra.mxu0 0.0
    %105 = vmatpush.msra.mxu0 0.0
    %106 = vmatpush.msra.mxu0 0.0
    %107 = vmatpush.msra.mxu0 0.0
    %108 = vmatpush.msra.mxu0 0.0
    %109 = vmatpush.msra.mxu0 0.0
    %110 = vmatpush.msra.mxu0 0.0
    %111 = vmatpush.msra.mxu0 0.0
    %112 = vmatpush.msra.mxu0 0.0
    %113 = vmatpush.msra.mxu0 %v67
    %114 = vmatpush.msra.mxu0 %v66
    %115 = vmatpush.msra.mxu0 %v65
    %116 = vmatpush.msra.mxu0 %v64
    %117 = vmatmul.f32.gmra.mxu0 %v99
    %v118 = vpop.f32.mrf.mxu0
    %v119 = vadd.f32 0.0, %v118
    %120 = vdwg.mxu0
    %v122 = vrot.slane %v119, 1
    %v125 = vadd.f32 %v89, %v119
    %v126 = vadd.f32 %v96, %v122
    %v128 = vperm.slane %v68, 0
    %v130 = vadd.f32 %v125, %v128
    %v131 = vadd.f32 %v126, %v128
    %v132 = vtanh.pop %v130
    %v133 = vtanh.pop %v131
    %134 = vset.pattern.permute.xlu0 1
    %135 = vperm.xlu0 %134, %v61
    %v136 = vpop.permute.xlu0 %135
    %138 = vset.pattern.permute.xlu0 1
    %139 = vperm.xlu0 %138, %v62
    %v140 = vpop.permute.xlu0 %139
    %v142 = vmul.f32 %v136, %v63
    %v143 = vmul.f32 %v140, %v63
    %v144 = vsel %vm82, %v142, 0.0
    %v145 = vrot.slane %v144, 4
    %v146 = vadd.f32 %v144, %v145
    %v147 = vrot.slane %v146, 2
    %v148 = vadd.f32 %v146, %v147
    %v149 = vrot.slane %v148, 1
    %v150 = vadd.f32 %v148, %v149
    %v151 = vsel %vm82, %v143, 0.0
    %v152 = vrot.slane %v151, 4
    %v153 = vadd.f32 %v151, %v152
    %v154 = vrot.slane %v153, 2
    %v155 = vadd.f32 %v153, %v154
    %v156 = vrot.slane %v155, 1
    %v157 = vadd.f32 %v155, %v156
    %v160 = vrot.slane %v133, 7
    %vm161 = vcmask 1041409
    %v162 = vsel %vm161, %v160, %v132
    %v163 = vsel %vm97, %v162, 0
    %165 = vmatpush.msra.mxu0 0.0
    %166 = vmatpush.msra.mxu0 0.0
    %167 = vmatpush.msra.mxu0 0.0
    %168 = vmatpush.msra.mxu0 0.0
    %169 = vmatpush.msra.mxu0 0.0
    %170 = vmatpush.msra.mxu0 0.0
    %171 = vmatpush.msra.mxu0 0.0
    %172 = vmatpush.msra.mxu0 0.0
    %173 = vmatpush.msra.mxu0 0.0
    %174 = vmatpush.msra.mxu0 0.0
    %175 = vmatpush.msra.mxu0 0.0
    %176 = vmatpush.msra.mxu0 0.0
    %177 = vmatpush.msra.mxu0 %v67
    %178 = vmatpush.msra.mxu0 %v66
    %179 = vmatpush.msra.mxu0 %v65
    %180 = vmatpush.msra.mxu0 %v64
    %181 = vmatmul.f32.gmra.mxu0 %v163
    %v182 = vpop.f32.mrf.mxu0
    %v183 = vadd.f32 0.0, %v182
    %184 = vdwg.mxu0
    %v186 = vrot.slane %v183, 1
    %v189 = vadd.f32 %v150, %v183
    %v190 = vadd.f32 %v157, %v186
    %v191 = vadd.f32 %v189, %v128
    %v192 = vadd.f32 %v190, %v128
    %v193 = vtanh.pop %v191
    %v194 = vtanh.pop %v192
    %195 = vset.pattern.permute.xlu0 2
    %196 = vperm.xlu0 %195, %v61
    %v197 = vpop.permute.xlu0 %196
    %199 = vset.pattern.permute.xlu0 2
    %200 = vperm.xlu0 %199, %v62
    %v201 = vpop.permute.xlu0 %200
    %v203 = vmul.f32 %v197, %v63
    %v204 = vmul.f32 %v201, %v63
    %v205 = vsel %vm82, %v203, 0.0
    %v206 = vrot.slane %v205, 4
    %v207 = vadd.f32 %v205, %v206
    %v208 = vrot.slane %v207, 2
    %v209 = vadd.f32 %v207, %v208
    %v210 = vrot.slane %v209, 1
    %v211 = vadd.f32 %v209, %v210
    %v212 = vsel %vm82, %v204, 0.0
    %v213 = vrot.slane %v212, 4
    %v214 = vadd.f32 %v212, %v213
    %v215 = vrot.slane %v214, 2
    %v216 = vadd.f32 %v214, %v215
    %v217 = vrot.slane %v216, 1
    %v218 = vadd.f32 %v216, %v217
    %v221 = vrot.slane %v194, 7
    %v222 = vsel %vm161, %v221, %v193
    %v223 = vsel %vm97, %v222, 0
    %225 = vmatpush.msra.mxu0 0.0
    %226 = vmatpush.msra.mxu0 0.0
    %227 = vmatpush.msra.mxu0 0.0
    %228 = vmatpush.msra.mxu0 0.0
    %229 = vmatpush.msra.mxu0 0.0
    %230 = vmatpush.msra.mxu0 0.0
    %231 = vmatpush.msra.mxu0 0.0
    %232 = vmatpush.msra.mxu0 0.0
    %233 = vmatpush.msra.mxu0 0.0
    %234 = vmatpush.msra.mxu0 0.0
    %235 = vmatpush.msra.mxu0 0.0
    %236 = vmatpush.msra.mxu0 0.0
    %237 = vmatpush.msra.mxu0 %v67
    %238 = vmatpush.msra.mxu0 %v66
    %239 = vmatpush.msra.mxu0 %v65
    %240 = vmatpush.msra.mxu0 %v64
    %241 = vmatmul.f32.gmra.mxu0 %v223
    %v242 = vpop.f32.mrf.mxu0
    %v243 = vadd.f32 0.0, %v242
    %244 = vdwg.mxu0
    %v246 = vrot.slane %v243, 1
    %v249 = vadd.f32 %v211, %v243
    %v250 = vadd.f32 %v218, %v246
    %v251 = vadd.f32 %v249, %v128
    %v252 = vadd.f32 %v250, %v128
    %v253 = vtanh.pop %v251
    %v254 = vtanh.pop %v252
    %255 = vset.pattern.permute.xlu0 3
    %256 = vperm.xlu0 %255, %v61
    %v257 = vpop.permute.xlu0 %256
    %259 = vset.pattern.permute.xlu0 3
    %260 = vperm.xlu0 %259, %v62
    %v261 = vpop.permute.xlu0 %260
    %v263 = vmul.f32 %v257, %v63
    %v264 = vmul.f32 %v261, %v63
    %v265 = vsel %vm82, %v263, 0.0
    %v266 = vrot.slane %v265, 4
    %v267 = vadd.f32 %v265, %v266
    %v268 = vrot.slane %v267, 2
    %v269 = vadd.f32 %v267, %v268
    %v270 = vrot.slane %v269, 1
    %v271 = vadd.f32 %v269, %v270
    %v272 = vsel %vm82, %v264, 0.0
    %v273 = vrot.slane %v272, 4
    %v274 = vadd.f32 %v272, %v273
    %v275 = vrot.slane %v274, 2
    %v276 = vadd.f32 %v274, %v275
    %v277 = vrot.slane %v276, 1
    %v278 = vadd.f32 %v276, %v277
    %v281 = vrot.slane %v254, 7
    %v282 = vsel %vm161, %v281, %v253
    %v283 = vsel %vm97, %v282, 0
    %285 = vmatpush.msra.mxu0 0.0
    %286 = vmatpush.msra.mxu0 0.0
    %287 = vmatpush.msra.mxu0 0.0
    %288 = vmatpush.msra.mxu0 0.0
    %289 = vmatpush.msra.mxu0 0.0
    %290 = vmatpush.msra.mxu0 0.0
    %291 = vmatpush.msra.mxu0 0.0
    %292 = vmatpush.msra.mxu0 0.0
    %293 = vmatpush.msra.mxu0 0.0
    %294 = vmatpush.msra.mxu0 0.0
    %295 = vmatpush.msra.mxu0 0.0
    %296 = vmatpush.msra.mxu0 0.0
    %297 = vmatpush.msra.mxu0 %v67
    %298 = vmatpush.msra.mxu0 %v66
    %299 = vmatpush.msra.mxu0 %v65
    %300 = vmatpush.msra.mxu0 %v64
    %301 = vmatmul.f32.gmra.mxu0 %v283
    %v302 = vpop.f32.mrf.mxu0
    %v303 = vadd.f32 0.0, %v302
    %304 = vdwg.mxu0
    %v306 = vrot.slane %v303, 1
    %v309 = vadd.f32 %v271, %v303
    %v310 = vadd.f32 %v278, %v306
    %v311 = vadd.f32 %v309, %v128
    %v312 = vadd.f32 %v310, %v128
    %v313 = vtanh.pop %v311
    %v314 = vtanh.pop %v312
    %315 = vset.pattern.permute.xlu0 4
    %316 = vperm.xlu0 %315, %v61
    %v317 = vpop.permute.xlu0 %316
    %319 = vset.pattern.permute.xlu0 4
    %320 = vperm.xlu0 %319, %v62
    %v321 = vpop.permute.xlu0 %320
    %v323 = vmul.f32 %v317, %v63
    %v324 = vmul.f32 %v321, %v63
    %v325 = vsel %vm82, %v323, 0.0
    %v326 = vrot.slane %v325, 4
    %v327 = vadd.f32 %v325, %v326
    %v328 = vrot.slane %v327, 2
    %v329 = vadd.f32 %v327, %v328
    %v330 = vrot.slane %v329, 1
    %v331 = vadd.f32 %v329, %v330
    %v332 = vsel %vm82, %v324, 0.0
    %v333 = vrot.slane %v332, 4
    %v334 = vadd.f32 %v332, %v333
    %v335 = vrot.slane %v334, 2
    %v336 = vadd.f32 %v334, %v335
    %v337 = vrot.slane %v336, 1
    %v338 = vadd.f32 %v336, %v337
    %v341 = vrot.slane %v314, 7
    %v342 = vsel %vm161, %v341, %v313
    %v343 = vsel %vm97, %v342, 0
    %345 = vmatpush.msra.mxu0 0.0
    %346 = vmatpush.msra.mxu0 0.0
    %347 = vmatpush.msra.mxu0 0.0
    %348 = vmatpush.msra.mxu0 0.0
    %349 = vmatpush.msra.mxu0 0.0
    %350 = vmatpush.msra.mxu0 0.0
    %351 = vmatpush.msra.mxu0 0.0
    %352 = vmatpush.msra.mxu0 0.0
    %353 = vmatpush.msra.mxu0 0.0
    %354 = vmatpush.msra.mxu0 0.0
    %355 = vmatpush.msra.mxu0 0.0
    %356 = vmatpush.msra.mxu0 0.0
    %357 = vmatpush.msra.mxu0 %v67
    %358 = vmatpush.msra.mxu0 %v66
    %359 = vmatpush.msra.mxu0 %v65
    %360 = vmatpush.msra.mxu0 %v64
    %361 = vmatmul.f32.gmra.mxu0 %v343
    %v362 = vpop.f32.mrf.mxu0
    %v363 = vadd.f32 0.0, %v362
    %364 = vdwg.mxu0
    %v366 = vrot.slane %v363, 1
    %v369 = vadd.f32 %v331, %v363
    %v370 = vadd.f32 %v338, %v366
    %v371 = vadd.f32 %v369, %v128
    %v372 = vadd.f32 %v370, %v128
    %v373 = vtanh.pop %v371
    %v374 = vtanh.pop %v372
    %375 = vset.pattern.permute.xlu0 5
    %376 = vperm.xlu0 %375, %v61
    %v377 = vpop.permute.xlu0 %376
    %379 = vset.pattern.permute.xlu0 5
    %380 = vperm.xlu0 %379, %v62
    %v381 = vpop.permute.xlu0 %380
    %v383 = vmul.f32 %v377, %v63
    %v384 = vmul.f32 %v381, %v63
    %v385 = vsel %vm82, %v383, 0.0
    %v386 = vrot.slane %v385, 4
    %v387 = vadd.f32 %v385, %v386
    %v388 = vrot.slane %v387, 2
    %v389 = vadd.f32 %v387, %v388
    %v390 = vrot.slane %v389, 1
    %v391 = vadd.f32 %v389, %v390
    %v392 = vsel %vm82, %v384, 0.0
    %v393 = vrot.slane %v392, 4
    %v394 = vadd.f32 %v392, %v393
    %v395 = vrot.slane %v394, 2
    %v396 = vadd.f32 %v394, %v395
    %v397 = vrot.slane %v396, 1
    %v398 = vadd.f32 %v396, %v397
    %v401 = vrot.slane %v374, 7
    %v402 = vsel %vm161, %v401, %v373
    %v403 = vsel %vm97, %v402, 0
    %405 = vmatpush.msra.mxu0 0.0
    %406 = vmatpush.msra.mxu0 0.0
    %407 = vmatpush.msra.mxu0 0.0
    %408 = vmatpush.msra.mxu0 0.0
    %409 = vmatpush.msra.mxu0 0.0
    %410 = vmatpush.msra.mxu0 0.0
    %411 = vmatpush.msra.mxu0 0.0
    %412 = vmatpush.msra.mxu0 0.0
    %413 = vmatpush.msra.mxu0 0.0
    %414 = vmatpush.msra.mxu0 0.0
    %415 = vmatpush.msra.mxu0 0.0
    %416 = vmatpush.msra.mxu0 0.0
    %417 = vmatpush.msra.mxu0 %v67
    %418 = vmatpush.msra.mxu0 %v66
    %419 = vmatpush.msra.mxu0 %v65
    %420 = vmatpush.msra.mxu0 %v64
    %421 = vmatmul.f32.gmra.mxu0 %v403
    %v422 = vpop.f32.mrf.mxu0
    %v423 = vadd.f32 0.0, %v422
    %424 = vdwg.mxu0
    %v426 = vrot.slane %v423, 1
    %v429 = vadd.f32 %v391, %v423
    %v430 = vadd.f32 %v398, %v426
    %v431 = vadd.f32 %v429, %v128
    %v432 = vadd.f32 %v430, %v128
    %v433 = vtanh.pop %v431
    %v434 = vtanh.pop %v432
    %435 = vset.pattern.permute.xlu0 6
    %436 = vperm.xlu0 %435, %v61
    %v437 = vpop.permute.xlu0 %436
    %439 = vset.pattern.permute.xlu0 6
    %440 = vperm.xlu0 %439, %v62
    %v441 = vpop.permute.xlu0 %440
    %v443 = vmul.f32 %v437, %v63
    %v444 = vmul.f32 %v441, %v63
    %v445 = vsel %vm82, %v443, 0.0
    %v446 = vrot.slane %v445, 4
    %v447 = vadd.f32 %v445, %v446
    %v448 = vrot.slane %v447, 2
    %v449 = vadd.f32 %v447, %v448
    %v450 = vrot.slane %v449, 1
    %v451 = vadd.f32 %v449, %v450
    %v452 = vsel %vm82, %v444, 0.0
    %v453 = vrot.slane %v452, 4
    %v454 = vadd.f32 %v452, %v453
    %v455 = vrot.slane %v454, 2
    %v456 = vadd.f32 %v454, %v455
    %v457 = vrot.slane %v456, 1
    %v458 = vadd.f32 %v456, %v457
    %v461 = vrot.slane %v434, 7
    %v462 = vsel %vm161, %v461, %v433
    %v463 = vsel %vm97, %v462, 0
    %465 = vmatpush.msra.mxu0 0.0
    %466 = vmatpush.msra.mxu0 0.0
    %467 = vmatpush.msra.mxu0 0.0
    %468 = vmatpush.msra.mxu0 0.0
    %469 = vmatpush.msra.mxu0 0.0
    %470 = vmatpush.msra.mxu0 0.0
    %471 = vmatpush.msra.mxu0 0.0
    %472 = vmatpush.msra.mxu0 0.0
    %473 = vmatpush.msra.mxu0 0.0
    %474 = vmatpush.msra.mxu0 0.0
    %475 = vmatpush.msra.mxu0 0.0
    %476 = vmatpush.msra.mxu0 0.0
    %477 = vmatpush.msra.mxu0 %v67
    %478 = vmatpush.msra.mxu0 %v66
    %479 = vmatpush.msra.mxu0 %v65
    %480 = vmatpush.msra.mxu0 %v64
    %481 = vmatmul.f32.gmra.mxu0 %v463
    %v482 = vpop.f32.mrf.mxu0
    %v483 = vadd.f32 0.0, %v482
    %484 = vdwg.mxu0
    %v486 = vrot.slane %v483, 1
    %v489 = vadd.f32 %v451, %v483
    %v490 = vadd.f32 %v458, %v486
    %v491 = vadd.f32 %v489, %v128
    %v492 = vadd.f32 %v490, %v128
    %v493 = vtanh.pop %v491
    %v494 = vtanh.pop %v492
    %495 = vset.pattern.permute.xlu0 7
    %496 = vperm.xlu0 %495, %v61
    %v497 = vpop.permute.xlu0 %496
    %499 = vset.pattern.permute.xlu0 7
    %500 = vperm.xlu0 %499, %v62
    %v501 = vpop.permute.xlu0 %500
    %v503 = vmul.f32 %v497, %v63
    %v504 = vmul.f32 %v501, %v63
    %v505 = vsel %vm82, %v503, 0.0
    %v506 = vrot.slane %v505, 4
    %v507 = vadd.f32 %v505, %v506
    %v508 = vrot.slane %v507, 2
    %v509 = vadd.f32 %v507, %v508
    %v510 = vrot.slane %v509, 1
    %v511 = vadd.f32 %v509, %v510
    %v512 = vsel %vm82, %v504, 0.0
    %v513 = vrot.slane %v512, 4
    %v514 = vadd.f32 %v512, %v513
    %v515 = vrot.slane %v514, 2
    %v516 = vadd.f32 %v514, %v515
    %v517 = vrot.slane %v516, 1
    %v518 = vadd.f32 %v516, %v517
    %v521 = vrot.slane %v494, 7
    %v522 = vsel %vm161, %v521, %v493
    %v523 = vsel %vm97, %v522, 0
    %525 = vmatpush.msra.mxu0 0.0
    %526 = vmatpush.msra.mxu0 0.0
    %527 = vmatpush.msra.mxu0 0.0
    %528 = vmatpush.msra.mxu0 0.0
    %529 = vmatpush.msra.mxu0 0.0
    %530 = vmatpush.msra.mxu0 0.0
    %531 = vmatpush.msra.mxu0 0.0
    %532 = vmatpush.msra.mxu0 0.0
    %533 = vmatpush.msra.mxu0 0.0
    %534 = vmatpush.msra.mxu0 0.0
    %535 = vmatpush.msra.mxu0 0.0
    %536 = vmatpush.msra.mxu0 0.0
    %537 = vmatpush.msra.mxu0 %v67
    %538 = vmatpush.msra.mxu0 %v66
    %539 = vmatpush.msra.mxu0 %v65
    %540 = vmatpush.msra.mxu0 %v64
    %541 = vmatmul.f32.gmra.mxu0 %v523
    %v542 = vpop.f32.mrf.mxu0
    %v543 = vadd.f32 0.0, %v542
    %544 = vdwg.mxu0
    %v546 = vrot.slane %v543, 1
    %v549 = vadd.f32 %v511, %v543
    %v550 = vadd.f32 %v518, %v546
    %v551 = vadd.f32 %v549, %v128
    %v552 = vadd.f32 %v550, %v128
    %v553 = vtanh.pop %v551
    %v554 = vtanh.pop %v552
    %v555 = vld [vmem:[%s5] sm:$0xff]
    %v556 = vld [vmem:[%s5 + $0x8] sm:$0xff]
    %v557 = vld [vmem:[%s5 + $0x10] sm:$0xff]
    %v558 = vld [vmem:[%s5 + $0x18] sm:$0xff]
    %v559 = vld [vmem:[%s6] sm:$0x1]
    %v561 = vperm.slane %v559, 0
    %562 = vrot.lane.b32.xlu0 %v561, 8
    %v563 = vpop.permute.xlu0 %562
    %v565 = vmul.f32 %v61, %v563
    %v566 = vmul.f32 %v62, %v563
    %569 = vrot.lane.b32.xlu0 %v565, 120
    %v570 = vpop.permute.xlu0 %569
    %571 = vrot.lane.b32.xlu0 %v566, 120
    %v572 = vpop.permute.xlu0 %571
    %vm575 = vcmask 24576
    %v576 = vsel %vm575, %v570, 0.0
    %577 = vadd.xlane.f32.xlu0 %v576
    %v578 = vpop.xlane.xlu0 %577
    %v579 = vsel %vm575, %v572, 0.0
    %580 = vadd.xlane.f32.xlu0 %v579
    %v581 = vpop.xlane.xlu0 %580
    %v584 = vrot.slane %v554, 7
    %v585 = vsel %vm161, %v584, %v553
    %v588 = vrot.slane %v581, 7
    %v589 = vsel %vm161, %v588, %v578
    %v591 = vsel %vm97, %v585, 0
    %593 = vmatpush.msra.mxu0 0.0
    %594 = vmatpush.msra.mxu0 0.0
    %595 = vmatpush.msra.mxu0 0.0
    %596 = vmatpush.msra.mxu0 0.0
    %597 = vmatpush.msra.mxu0 0.0
    %598 = vmatpush.msra.mxu0 0.0
    %599 = vmatpush.msra.mxu0 0.0
    %600 = vmatpush.msra.mxu0 0.0
    %601 = vmatpush.msra.mxu0 0.0
    %602 = vmatpush.msra.mxu0 0.0
    %603 = vmatpush.msra.mxu0 0.0
    %604 = vmatpush.msra.mxu0 0.0
    %605 = vmatpush.msra.mxu0 %v558
    %606 = vmatpush.msra.mxu0 %v557
    %607 = vmatpush.msra.mxu0 %v556
    %608 = vmatpush.msra.mxu0 %v555
    %609 = vmatmul.f32.gmra.mxu0 %v591
    %v610 = vpop.f32.mrf.mxu0
    %v611 = vadd.f32 %v589, %v610
    %612 = vdwg.mxu0
    %v613 = vld [vmem:[#allocation2] sm:$0x1]
    %v615 = vperm.slane %v613, 0
    %v617 = vadd.f32 %v611, %v615
    %vm618 = vcmask 1024
    %619 = vst.msk [vmem:[%s8] sm:$0x3] %vm618, %v617
    // Predicated region
    $region42: #{tpu_custom_call.1} parent=1 // pred_check
      _
    $region43: #{tpu_custom_call.1} parent=1 // pred_check_branch
      %621 = sbr.rel (0) target = $region45
    $region44: #{tpu_custom_call.1} parent=1 // pred_region
      _
    $region45: #{tpu_custom_call.1} parent=1 // pred_fallthru
      _
    // Predicated region
    $region46: #{tpu_custom_call.1} parent=1 // pred_check
      _
    $region47: #{tpu_custom_call.1} parent=1 // pred_check_branch
      %623 = sbr.rel (0) target = $region49
    $region48: #{tpu_custom_call.1} parent=1 // pred_region
      _
    $region49: #{tpu_custom_call.1} parent=1 // pred_fallthru
      _
    %624 = vsyncpa [#allocation4], 1
    %625 = vsyncpa [#allocation6], 1

</llo_original>
